<compile_context>
chip_gen: v5e
topology: v5e:2x2
jax: 0.10.0
libtpu: 0.0.40
codegen_flags: <defaults>
</compile_context>

<pallas_src>
import functools

import numpy as np
import jax
import jax.numpy as jnp
from jax.experimental import pallas as pl
from jax.experimental.pallas import tpu as pltpu

ALPHA = 0.001
EPS = 1e-6
LANE = 128
SUB = 8  # sublane granularity of the in-kernel accumulation loop


def _ceil_div(a, b):
    return -(-a // b)


# ----------------------------------------------------------------------------
# Host-side weight construction (cached per (h, w, n, alpha))
# ----------------------------------------------------------------------------
def _bilinear_weight_matrix(in_size: int, out_size: int) -> np.ndarray:
    """W[k, j] = contribution of 1-D source index k to output index j for
    F.interpolate(mode='bilinear', align_corners=True) along one axis."""
    W = np.zeros((in_size, out_size), dtype=np.float64)
    if out_size == 1:
        W[0, 0] = 1.0
        return W
    scale = (in_size - 1) / (out_size - 1)
    for j in range(out_size):
        x = j * scale
        x0 = min(int(np.floor(x)), in_size - 1)
        x1 = min(x0 + 1, in_size - 1)
        t = x - x0
        W[x0, j] += 1.0 - t
        W[x1, j] += t
    return W


def _fold_loss2_weights(h: int, w: int, n: int, alpha: float) -> np.ndarray:
    """Per-pixel weights g[h,w] such that
         alpha * mean_{N,1,H,W}((dx_up + dy_up)/2)  ==  sum_{n,h,w} ci * g
    (dx/dy finite differences + bilinear upsample folded analytically)."""
    cwx = _bilinear_weight_matrix(w - 1, w).sum(axis=1)   # (W-1,)
    rwy = _bilinear_weight_matrix(h - 1, h).sum(axis=1)   # (H-1,)
    gx = np.zeros((w,), np.float64)
    gx[: w - 1] += cwx
    gx[1:] -= cwx
    gy = np.zeros((h,), np.float64)
    gy[: h - 1] += rwy
    gy[1:] -= rwy
    g2d = gx[None, :] + gy[:, None]                       # (H, W)
    g2d *= alpha / (2.0 * n * h * w)
    return g2d.astype(np.float32)


@functools.lru_cache(maxsize=64)
def _loss2_weights_device(h: int, w: int, n: int, alpha: float):
    # Built once per (h, w, n, alpha); avoids re-uploading an H*W constant
    # on every eager call.
    return jnp.asarray(_fold_loss2_weights(h, w, n, alpha).reshape(-1))


def _pred_block_budget_bytes() -> int:
    """Target bytes of logits per block (generation-aware)."""
    try:
        vmem = pltpu.get_tpu_info().vmem_capacity_bytes
    except Exception:
        vmem = 64 * 1024 * 1024
    # v5e/v6e (128 MiB VMEM): 8 MiB blocks; v7x (64 MiB VMEM): 4 MiB blocks.
    return (8 if vmem >= 100 * 1024 * 1024 else 4) * 1024 * 1024


# ----------------------------------------------------------------------------
# Pallas kernel: per-tile weighted partial sums
# ----------------------------------------------------------------------------
def _levelset_partial_kernel(img_ref, pred_ref, g_ref, out_ref, *, sub):
    # img_ref : (N, TC, 128)      image, zero-padded past the valid columns
    # pred_ref: (N, C, TC, 128)   logits, zero-padded past the valid columns
    # g_ref   : (TC, 128)         folded loss2 weights (already * alpha/(2NHW))
    # out_ref : (1, 4*C, 128)     per-tile partial sums  [S0 | S1 | S2 | Sg]
    c = pred_ref.shape[1]
    tile_chunks = pred_ref.shape[2]
    num_sub = tile_chunks // sub

    def _reduce_nc(x):
        # (N, C, sub, 128) -> (C, 128): leading-axis adds, then sublane reduce.
        return jnp.sum(jnp.sum(x, axis=0), axis=1)

    def body(i, carry):
        a0, a1, a2, a3 = carry
        off = pl.multiple_of(i * sub, sub)
        pred = pred_ref[:, :, pl.ds(off, sub), :]            # (N, C, sub, 128)
        img = img_ref[:, pl.ds(off, sub), :][:, None]        # (N, 1, sub, 128)
        g = g_ref[pl.ds(off, sub), :][None, None]            # (1, 1, sub, 128)

        # Stable softmax for this sub-chunk; reciprocal on the EUP + 1 Newton
        # step (keeps full f32 accuracy without a VALU divide).
        m = jnp.max(pred, axis=1, keepdims=True)             # (N, 1, sub, 128)
        e = jnp.exp(pred - m)                                 # (N, C, sub, 128)
        denom = jnp.sum(e, axis=1, keepdims=True)             # (N, 1, sub, 128)
        r = pl.reciprocal(denom, approx=True)
        inv = r * (2.0 - denom * r)
        q = e * inv                                            # softmax probs
        t = q * img

        a0 = a0 + _reduce_nc(q)                                # sum(ci)
        a1 = a1 + _reduce_nc(t)                                # sum(img*ci)
        a2 = a2 + _reduce_nc(t * img)                          # sum(img^2*ci)
        a3 = a3 + _reduce_nc(q * g)                            # sum(g*ci)
        return a0, a1, a2, a3

    z = jnp.zeros((c, LANE), jnp.float32)
    a0, a1, a2, a3 = jax.lax.fori_loop(0, num_sub, body, (z, z, z, z))
    # Single dense, unmasked store per tile.
    out_ref[...] = jnp.concatenate([a0, a1, a2, a3], axis=0)[None]


# ----------------------------------------------------------------------------
# Wrapper
# ----------------------------------------------------------------------------
def level_set_energy_loss(img, predict, alpha=ALPHA):
    """Pallas implementation of LevelSetEnergyLoss.forward(img, predict)."""
    img = jnp.asarray(img, jnp.float32)
    predict = jnp.asarray(predict, jnp.float32)
    n, c, h, w = predict.shape
    assert img.shape == (n, 1, h, w), (img.shape, predict.shape)
    assert h >= 2 and w >= 2, "spatial dims must be >= 2 for the dx/dy terms"
    p = h * w
    nc_total = _ceil_div(p, LANE)                 # number of 128-lane chunks

    # --- choose the lane tiling ---------------------------------------------
    if nc_total <= SUB:
        # Tiny spatial extent: one block covering everything (the block then
        # spans the full second-minor dim, satisfying the (8,128) rule).
        num_tiles = 1
        tile_chunks = nc_total
        sub = tile_chunks
    else:
        bytes_per_chunk = 4 * n * c * LANE
        target_chunks = max(
            SUB, (_pred_block_budget_bytes() // bytes_per_chunk) // SUB * SUB)
        # >= 2 tiles so both v7x TensorCores get work; single axis is parallel.
        num_tiles = max(2, _ceil_div(nc_total, target_chunks))
        tile_chunks = _ceil_div(_ceil_div(nc_total, num_tiles), SUB) * SUB
        sub = SUB
        while sub > 1 and n * c * sub > 64:        # keep per-iter slab in vregs
            sub //= 2
    nc_pad = num_tiles * tile_chunks
    p_pad = nc_pad * LANE

    # --- lane-dense layouts: trailing dims are (chunks, 128) -----------------
    pred_r = predict.reshape(n, c, p)
    img_r = img.reshape(n, p)
    g_r = _loss2_weights_device(h, w, n, float(alpha))
    if p_pad != p:
        # Zero padding keeps the kernel mask-free; the constant softmax
        # contribution of padded columns is removed analytically below.
        pred_r = jnp.pad(pred_r, ((0, 0), (0, 0), (0, p_pad - p)))
        img_r = jnp.pad(img_r, ((0, 0), (0, p_pad - p)))
        g_r = jnp.pad(g_r, ((0, p_pad - p),))
    pred_r = pred_r.reshape(n, c, nc_pad, LANE)
    img_r = img_r.reshape(n, nc_pad, LANE)
    g_r = g_r.reshape(nc_pad, LANE)

    kernel = functools.partial(_levelset_partial_kernel, sub=sub)

    cost = pl.CostEstimate(
        flops=16 * n * c * p_pad + 6 * n * p_pad,
        transcendentals=n * (c + 1) * p_pad,
        bytes_accessed=4 * (n * (c + 1) * p_pad + p_pad
                            + num_tiles * 4 * c * LANE),
    )

    partials = pl.pallas_call(
        kernel,
        out_shape=jax.ShapeDtypeStruct((num_tiles, 4 * c, LANE), jnp.float32),
        grid=(num_tiles,),
        in_specs=[
            pl.BlockSpec((n, tile_chunks, LANE), lambda t: (0, t, 0)),
            pl.BlockSpec((n, c, tile_chunks, LANE), lambda t: (0, 0, t, 0)),
            pl.BlockSpec((tile_chunks, LANE), lambda t: (t, 0)),
        ],
        out_specs=pl.BlockSpec((1, 4 * c, LANE), lambda t: (t, 0, 0)),
        compiler_params=pltpu.CompilerParams(
            dimension_semantics=("parallel",),
            vmem_limit_bytes=48 * 1024 * 1024,
        ),
        cost_estimate=cost,
    )(img_r, pred_r, g_r)

    # --- tiny final reduction + scalar combination (4*C numbers) -------------
    sums = jnp.sum(partials, axis=(0, 2)).reshape(4, c)
    s0, s1, s2, sg = sums[0], sums[1], sums[2], sums[3]
    # Zero-padded columns contribute exactly 1/C per class to S0 (and 0 to the
    # img / g weighted sums because img and g are zero there).
    s0 = s0 - (n * (p_pad - p)) / c
    mean = s1 / (s0 + EPS)
    loss1 = (s2 - 2.0 * mean * s1 + mean * mean * s0) / float(n * h * w)
    return jnp.sum(loss1) + jnp.sum(sg)


# ----------------------------------------------------------------------------
# Pure-JAX reference (literal transcription of the PyTorch forward)
# ----------------------------------------------------------------------------
def reference_loss(img, predict, alpha=ALPHA):
    soft = jax.nn.softmax(predict, axis=1)
    n, c, h, w = predict.shape
    Wx = jnp.asarray(_bilinear_weight_matrix(w - 1, w), jnp.float32)
    Wy = jnp.asarray(_bilinear_weight_matrix(h - 1, h), jnp.float32)
    loss = jnp.zeros((n, 1, h, w), jnp.float32)
    for i in range(c):
        ci = soft[:, i:i + 1]
        mean_i = jnp.sum(img * ci) / (jnp.sum(ci) + EPS)
        loss1 = jnp.mean((img - mean_i) ** 2 * ci)
        dx = ci[:, :, :, 0:w - 1] - ci[:, :, :, 1:w]
        dx_up = jnp.einsum('nchk,kj->nchj', dx, Wx)
        dy = ci[:, :, 0:h - 1, :] - ci[:, :, 1:h, :]
        dy_up = jnp.einsum('nckw,ki->nciw', dy, Wy)
        loss2 = (dx_up + dy_up) / 2.0
        loss = loss + loss1 + alpha * loss2
    return jnp.mean(loss)


if __name__ == "__main__":
    key = jax.random.PRNGKey(0)
    ks = jax.random.split(key, 8)

    def _check(img, pred):
        out = jax.block_until_ready(level_set_energy_loss(img, pred))
        ref = reference_loss(img, pred)
        assert np.allclose(np.asarray(out), np.asarray(ref),
                           rtol=3e-4, atol=1e-5), (float(out), float(ref))

    # Case 1: module-consistent small shapes; single tile, no padding.
    _check(jax.random.normal(ks[0], (2, 1, 16, 16), dtype=jnp.float32),
           jax.random.normal(ks[1], (2, 4, 16, 16), dtype=jnp.float32))

    # Case 2: ragged H*W (240 -> 256) exercises zero-pad + analytic S0 fix, C=3.
    _check(jax.random.normal(ks[2], (1, 1, 12, 20), dtype=jnp.float32),
           jax.random.normal(ks[3], (1, 3, 12, 20), dtype=jnp.float32))

    # Case 3: multi-tile parallel grid (2 tiles), no padding, C=4.
    _check(jax.random.normal(ks[4], (2, 1, 32, 64), dtype=jnp.float32),
           jax.random.normal(ks[5], (2, 4, 32, 64), dtype=jnp.float32))

    # Case 4: 2 tiles + >1 fori_loop sub-chunk + ragged padding, C=3.
    _check(jax.random.normal(ks[6], (1, 1, 40, 56), dtype=jnp.float32),
           jax.random.normal(ks[7], (1, 3, 40, 56), dtype=jnp.float32))

    print("KERNEL_OK")
</pallas_src>

<mosaic_0001>
module attributes {stable_mosaic.version = 11 : i64} {
  func.func @_levelset_partial_kernel(%arg0: i32, %arg1: memref<2x2x128xf32, #tpu.memory_space<vmem>>, %arg2: memref<2x4x2x128xf32, #tpu.memory_space<vmem>>, %arg3: memref<2x128xf32, #tpu.memory_space<vmem>>, %arg4: memref<1x16x128xf32, #tpu.memory_space<vmem>>) attributes {dimension_semantics = [#tpu.dimension_semantics<parallel>], iteration_bounds = array<i64: 1>, scalar_prefetch = 0 : i64, scratch_operands = 0 : i64, tpu.core_type = #tpu.core_type<tc>, window_params = [{transform_indices = @transform_0, window_bounds = array<i64: 2, 2, 128>}, {transform_indices = @transform_1, window_bounds = array<i64: 2, 4, 2, 128>}, {transform_indices = @transform_2, window_bounds = array<i64: 2, 128>}, {transform_indices = @transform_3, window_bounds = array<i64: 1, 16, 128>}]} {
    %cst = arith.constant 0.000000e+00 : f32
    %0 = vector.broadcast %cst : f32 to vector<4x128xf32>
    %c0_i32 = arith.constant 0 : i32
    %c2_i32 = arith.constant 2 : i32
    %1 = arith.muli %c0_i32, %c2_i32 : i32
    %2 = tpu.assume_multiple %1, 2 : i32
    %c0 = arith.constant 0 : index
    %c0_0 = arith.constant 0 : index
    %3 = arith.index_cast %2 : i32 to index
    %c0_1 = arith.constant 0 : index
    %4 = vector.load %arg2[%c0, %c0_0, %3, %c0_1] : memref<2x4x2x128xf32, #tpu.memory_space<vmem>>, vector<2x4x2x128xf32>
    %c0_2 = arith.constant 0 : index
    %5 = arith.index_cast %2 : i32 to index
    %c0_3 = arith.constant 0 : index
    %6 = vector.load %arg1[%c0_2, %5, %c0_3] : memref<2x2x128xf32, #tpu.memory_space<vmem>>, vector<2x2x128xf32>
    %7 = vector.shape_cast %6 : vector<2x2x128xf32> to vector<2x1x2x128xf32>
    %8 = arith.index_cast %2 : i32 to index
    %c0_4 = arith.constant 0 : index
    %9 = vector.load %arg3[%8, %c0_4] : memref<2x128xf32, #tpu.memory_space<vmem>>, vector<2x128xf32>
    %10 = vector.shape_cast %9 : vector<2x128xf32> to vector<1x1x2x128xf32>
    %cst_5 = arith.constant dense<0xFF800000> : vector<2x2x128xf32>
    %11 = vector.multi_reduction <maximumf>, %4, %cst_5 [1] : vector<2x4x2x128xf32> to vector<2x2x128xf32>
    %12 = vector.shape_cast %11 : vector<2x2x128xf32> to vector<2x1x2x128xf32>
    %13 = vector.broadcast %12 : vector<2x1x2x128xf32> to vector<2x4x2x128xf32>
    %14 = arith.subf %4, %13 : vector<2x4x2x128xf32>
    %15 = math.exp %14 : vector<2x4x2x128xf32>
    %cst_6 = arith.constant dense<0.000000e+00> : vector<2x2x128xf32>
    %16 = vector.multi_reduction <add>, %15, %cst_6 [1] : vector<2x4x2x128xf32> to vector<2x2x128xf32>
    %17 = vector.shape_cast %16 : vector<2x2x128xf32> to vector<2x1x2x128xf32>
    %18 = tpu.reciprocal %17 {approx = true} : vector<2x1x2x128xf32> -> vector<2x1x2x128xf32>
    %19 = arith.mulf %17, %18 : vector<2x1x2x128xf32>
    %cst_7 = arith.constant 2.000000e+00 : f32
    %20 = vector.broadcast %cst_7 : f32 to vector<2x1x2x128xf32>
    %21 = arith.subf %20, %19 : vector<2x1x2x128xf32>
    %22 = arith.mulf %18, %21 : vector<2x1x2x128xf32>
    %23 = vector.broadcast %22 : vector<2x1x2x128xf32> to vector<2x4x2x128xf32>
    %24 = arith.mulf %15, %23 : vector<2x4x2x128xf32>
    %25 = vector.broadcast %7 : vector<2x1x2x128xf32> to vector<2x4x2x128xf32>
    %26 = arith.mulf %24, %25 : vector<2x4x2x128xf32>
    %cst_8 = arith.constant dense<0.000000e+00> : vector<4x2x128xf32>
    %27 = vector.multi_reduction <add>, %24, %cst_8 [0] : vector<2x4x2x128xf32> to vector<4x2x128xf32>
    %cst_9 = arith.constant dense<0.000000e+00> : vector<4x128xf32>
    %28 = vector.multi_reduction <add>, %27, %cst_9 [1] : vector<4x2x128xf32> to vector<4x128xf32>
    %29 = arith.addf %0, %28 : vector<4x128xf32>
    %cst_10 = arith.constant dense<0.000000e+00> : vector<4x2x128xf32>
    %30 = vector.multi_reduction <add>, %26, %cst_10 [0] : vector<2x4x2x128xf32> to vector<4x2x128xf32>
    %cst_11 = arith.constant dense<0.000000e+00> : vector<4x128xf32>
    %31 = vector.multi_reduction <add>, %30, %cst_11 [1] : vector<4x2x128xf32> to vector<4x128xf32>
    %32 = arith.addf %0, %31 : vector<4x128xf32>
    %33 = vector.broadcast %7 : vector<2x1x2x128xf32> to vector<2x4x2x128xf32>
    %34 = arith.mulf %26, %33 : vector<2x4x2x128xf32>
    %cst_12 = arith.constant dense<0.000000e+00> : vector<4x2x128xf32>
    %35 = vector.multi_reduction <add>, %34, %cst_12 [0] : vector<2x4x2x128xf32> to vector<4x2x128xf32>
    %cst_13 = arith.constant dense<0.000000e+00> : vector<4x128xf32>
    %36 = vector.multi_reduction <add>, %35, %cst_13 [1] : vector<4x2x128xf32> to vector<4x128xf32>
    %37 = arith.addf %0, %36 : vector<4x128xf32>
    %38 = vector.broadcast %10 : vector<1x1x2x128xf32> to vector<2x4x2x128xf32>
    %39 = arith.mulf %24, %38 : vector<2x4x2x128xf32>
    %cst_14 = arith.constant dense<0.000000e+00> : vector<4x2x128xf32>
    %40 = vector.multi_reduction <add>, %39, %cst_14 [0] : vector<2x4x2x128xf32> to vector<4x2x128xf32>
    %cst_15 = arith.constant dense<0.000000e+00> : vector<4x128xf32>
    %41 = vector.multi_reduction <add>, %40, %cst_15 [1] : vector<4x2x128xf32> to vector<4x128xf32>
    %42 = arith.addf %0, %41 : vector<4x128xf32>
    %c1_i32 = arith.constant 1 : i32
    %43 = tpu.concatenate %29, %32, %37, %42 in 0 : vector<4x128xf32>, vector<4x128xf32>, vector<4x128xf32>, vector<4x128xf32> -> vector<16x128xf32>
    %44 = vector.shape_cast %43 : vector<16x128xf32> to vector<1x16x128xf32>
    %c0_16 = arith.constant 0 : index
    %c0_17 = arith.constant 0 : index
    %c0_18 = arith.constant 0 : index
    %45 = vector.load %arg4[%c0_16, %c0_17, %c0_18] : memref<1x16x128xf32, #tpu.memory_space<vmem>>, vector<1x16x128xf32>
    tpu.vector_store %arg4[%c0_16, %c0_17, %c0_18], %44 {strides = array<i32>} : memref<1x16x128xf32, #tpu.memory_space<vmem>>, vector<1x16x128xf32>,
    return
  }
  func.func @transform_0(%arg0: i32) -> (i32, i32, i32) {
    %c0_i32 = arith.constant 0 : i32
    %c0_i32_0 = arith.constant 0 : i32
    %c0_i32_1 = arith.constant 0 : i32
    return %c0_i32, %arg0, %c0_i32_0 : i32, i32, i32
  }
  func.func @transform_1(%arg0: i32) -> (i32, i32, i32, i32) {
    %c0_i32 = arith.constant 0 : i32
    %c0_i32_0 = arith.constant 0 : i32
    %c0_i32_1 = arith.constant 0 : i32
    %c0_i32_2 = arith.constant 0 : i32
    return %c0_i32, %c0_i32_0, %arg0, %c0_i32_1 : i32, i32, i32, i32
  }
  func.func @transform_2(%arg0: i32) -> (i32, i32) {
    %c0_i32 = arith.constant 0 : i32
    %c0_i32_0 = arith.constant 0 : i32
    return %arg0, %c0_i32 : i32, i32
  }
  func.func @transform_3(%arg0: i32) -> (i32, i32, i32) {
    %c0_i32 = arith.constant 0 : i32
    %c0_i32_0 = arith.constant 0 : i32
    %c0_i32_1 = arith.constant 0 : i32
    return %arg0, %c0_i32, %c0_i32_0 : i32, i32, i32
  }
}

</mosaic_0001>

<llo_original>
// kernel: tpu_custom_call.1
$region0: #{tpu_custom_call.1}
  #allocation0 [shape = 'u32[]', space=smem, size = 0x4, offset = 0x4, fixed_abs, tag = 'smem constant byte address 0x4 - core index']
  #allocation1 [shape = 'u32[72,128]{1,0:T(1,128)}', space=vmem, size = 0x9000, scoped, tag = 'internal scratch']
  %s0 = inlined_call_operand.hbm [shape: f32[2,2,128], index: 0, kind: input, shape index: {}]
  %s1 = inlined_call_operand.hbm [shape: f32[2,4,2,128], index: 1, kind: input, shape index: {}]
  %s2 = inlined_call_operand.hbm [shape: f32[2,128], index: 2, kind: input, shape index: {}]
  %s3 = inlined_call_operand.hbm [shape: f32[1,16,128], index: 3, kind: output, shape index: {}]
  %s4 = sld [smem:[#allocation0]]
  $region34: #{tpu_custom_call.1} parent=0
    _
  %s6 = ssub.s32 1, %s4
  %s7 = scalar_select 0, %s6, %s4
  $region1: #{tpu_custom_call.1} parent=0
    #allocation2 [shape = 'u8[2048]{0}', space=vmem, size = 0x800, scoped, tag = 'input window, operand 0, single buffered']
    #allocation3 [shape = 's32[1]{0}', space=sflag, size = 0x4, scoped, tag = 'scoped memory for tpu_custom_call.1']
    #allocation4 [shape = 's32[1]{0}', space=sflag, size = 0x4, scoped, tag = 'scoped memory for tpu_custom_call.1']
    #allocation5 [shape = 'u8[8192]{0}', space=vmem, size = 0x2000, scoped, tag = 'input window, operand 1, single buffered']
    #allocation6 [shape = 's32[1]{0}', space=sflag, size = 0x4, scoped, tag = 'scoped memory for tpu_custom_call.1']
    #allocation7 [shape = 'u8[1024]{0}', space=vmem, size = 0x400, scoped, tag = 'input window, operand 2, single buffered']
    #allocation8 [shape = 'u8[8192]{0}', space=vmem, size = 0x2000, scoped, tag = 'output window, operand 0, single buffered']
    %8 = vsyncpa [#allocation3], 0
    %9 = vsyncpa [#allocation6], 0
    %10 = vsyncpa [#allocation4], 0
    // Predicated region
    $region2: #{tpu_custom_call.1} parent=1 // pred_check
      _
    $region3: #{tpu_custom_call.1} parent=1 // pred_check_branch
      %12 = sbr.rel (0) target = $region5
    $region4: #{tpu_custom_call.1} parent=1 // pred_region
      %14 = vsyncadd [#allocation3], 0
      %s15 = sshll.u32 %s0, 4
      %s16 = int_to_ptr.hbm [resolvable:$true] %s15
      %s17 = sshll.u32 [#allocation2], 4
      %s18 = int_to_ptr.vmem [resolvable:$true] %s17
      %23 = dma.hbm_to_vmem [thread:$0]  %s16, 64, %s18, [#allocation3], 32, 32, 2
    $region5: #{tpu_custom_call.1} parent=1 // pred_fallthru
      _
    // Predicated region
    $region6: #{tpu_custom_call.1} parent=1 // pred_check
      _
    $region7: #{tpu_custom_call.1} parent=1 // pred_check_branch
      %25 = sbr.rel (0) target = $region9
    $region8: #{tpu_custom_call.1} parent=1 // pred_region
      %27 = vsyncadd [#allocation6], 0
      %s28 = sshll.u32 %s1, 4
      %s29 = int_to_ptr.hbm [resolvable:$true] %s28
      %s30 = sshll.u32 [#allocation5], 4
      %s31 = int_to_ptr.vmem [resolvable:$true] %s30
      %36 = dma.hbm_to_vmem [thread:$0]  %s29, 256, %s31, [#allocation6], 32, 32, 2
    $region9: #{tpu_custom_call.1} parent=1 // pred_fallthru
      _
    // Predicated region
    $region10: #{tpu_custom_call.1} parent=1 // pred_check
      _
    $region11: #{tpu_custom_call.1} parent=1 // pred_check_branch
      %38 = sbr.rel (0) target = $region13
    $region12: #{tpu_custom_call.1} parent=1 // pred_region
      %40 = vsyncadd [#allocation6], 0
      %s42 = sshll.u32 %s2, 4
      %s43 = int_to_ptr.hbm [resolvable:$true] %s42
      %s44 = sshll.u32 [#allocation7], 4
      %s45 = int_to_ptr.vmem [resolvable:$true] %s44
      %47 = dma.hbm_to_vmem [thread:$0]  %s43, 32, %s45, [#allocation6]
    $region13: #{tpu_custom_call.1} parent=1 // pred_fallthru
      _
    // Predicated region
    $region14: #{tpu_custom_call.1} parent=1 // pred_check
      _
    $region15: #{tpu_custom_call.1} parent=1 // pred_check_branch
      %49 = sbr.rel (0) target = $region17
    $region16: #{tpu_custom_call.1} parent=1 // pred_region
      %51 = dma.done [#allocation3], 64
    $region17: #{tpu_custom_call.1} parent=1 // pred_fallthru
      _
    // Predicated region
    $region18: #{tpu_custom_call.1} parent=1 // pred_check
      _
    $region19: #{tpu_custom_call.1} parent=1 // pred_check_branch
      %53 = sbr.rel (0) target = $region21
    $region20: #{tpu_custom_call.1} parent=1 // pred_region
      %55 = dma.done [#allocation6], 256
    $region21: #{tpu_custom_call.1} parent=1 // pred_fallthru
      _
    // Predicated region
    $region22: #{tpu_custom_call.1} parent=1 // pred_check
      _
    $region23: #{tpu_custom_call.1} parent=1 // pred_check_branch
      %57 = sbr.rel (0) target = $region25
    $region24: #{tpu_custom_call.1} parent=1 // pred_region
      %59 = dma.done [#allocation6], 32
    $region25: #{tpu_custom_call.1} parent=1 // pred_fallthru
      _
    %v60 = vld [vmem:[#allocation5] sm:$0x3]
    %v61 = vld [vmem:[#allocation5 + $0x2] sm:$0x3]
    %v62 = vld [vmem:[#allocation5 + $0x4] sm:$0x3]
    %v63 = vld [vmem:[#allocation5 + $0x6] sm:$0x3]
    %v64 = vld [vmem:[#allocation5 + $0x8] sm:$0x3]
    %v65 = vld [vmem:[#allocation5 + $0xa] sm:$0x3]
    %v66 = vld [vmem:[#allocation5 + $0xc] sm:$0x3]
    %v67 = vld [vmem:[#allocation5 + $0xe] sm:$0x3]
    %v68 = vld [vmem:[#allocation2] sm:$0x3]
    %v69 = vld [vmem:[#allocation2 + $0x2] sm:$0x3]
    %v70 = vld [vmem:[#allocation7] sm:$0x3]
    %vm71 = vcmask 1041408
    %v72 = vsel %vm71, %v60, -inf
    %v73 = vsel %vm71, %v61, -inf
    %v74 = vsel %vm71, %v62, -inf
    %v75 = vmax.f32 %v72, %v74
    %v76 = vsel %vm71, %v63, -inf
    %v77 = vmax.f32 %v73, %v76
    %v78 = vmax.f32 %v75, %v77
    %v79 = vsel %vm71, %v64, -inf
    %v80 = vsel %vm71, %v65, -inf
    %v81 = vsel %vm71, %v66, -inf
    %v82 = vmax.f32 %v79, %v81
    %v83 = vsel %vm71, %v67, -inf
    %v84 = vmax.f32 %v80, %v83
    %v85 = vmax.f32 %v82, %v84
    %v86 = vsub.f32 %v60, %v78
    %v87 = vsub.f32 %v61, %v78
    %v88 = vsub.f32 %v62, %v78
    %v89 = vsub.f32 %v63, %v78
    %v90 = vsub.f32 %v64, %v85
    %v91 = vsub.f32 %v65, %v85
    %v92 = vsub.f32 %v66, %v85
    %v93 = vsub.f32 %v67, %v85
    %v94 = vmul.f32 %v86, 1.442695
    %v95 = vpow.pop %v94
    %v96 = vmul.f32 %v87, 1.442695
    %v97 = vpow.pop %v96
    %v98 = vmul.f32 %v88, 1.442695
    %v99 = vpow.pop %v98
    %v100 = vmul.f32 %v89, 1.442695
    %v101 = vpow.pop %v100
    %v102 = vmul.f32 %v90, 1.442695
    %v103 = vpow.pop %v102
    %v104 = vmul.f32 %v91, 1.442695
    %v105 = vpow.pop %v104
    %v106 = vmul.f32 %v92, 1.442695
    %v107 = vpow.pop %v106
    %v108 = vmul.f32 %v93, 1.442695
    %v109 = vpow.pop %v108
    %v110 = vsel %vm71, %v95, 0.0
    %v111 = vsel %vm71, %v97, 0.0
    %v112 = vadd.f32 %v110, %v111
    %v113 = vsel %vm71, %v99, 0.0
    %v114 = vadd.f32 %v112, %v113
    %v115 = vsel %vm71, %v101, 0.0
    %v116 = vadd.f32 %v114, %v115
    %v117 = vsel %vm71, %v103, 0.0
    %v118 = vsel %vm71, %v105, 0.0
    %v119 = vadd.f32 %v117, %v118
    %v120 = vsel %vm71, %v107, 0.0
    %v121 = vadd.f32 %v119, %v120
    %v122 = vsel %vm71, %v109, 0.0
    %v123 = vadd.f32 %v121, %v122
    %v124 = vrcp.pop %v116
    %v125 = vrcp.pop %v123
    %v126 = vmul.f32 %v116, %v124
    %v127 = vmul.f32 %v123, %v125
    %v128 = vsub.f32 2.0, %v126
    %v129 = vsub.f32 2.0, %v127
    %v130 = vmul.f32 %v124, %v128
    %v131 = vmul.f32 %v125, %v129
    %v132 = vmul.f32 %v95, %v130
    %v133 = vmul.f32 %v97, %v130
    %v134 = vmul.f32 %v99, %v130
    %v135 = vmul.f32 %v101, %v130
    %v136 = vmul.f32 %v103, %v131
    %v137 = vmul.f32 %v105, %v131
    %v138 = vmul.f32 %v107, %v131
    %v139 = vmul.f32 %v109, %v131
    %v140 = vmul.f32 %v132, %v68
    %v141 = vmul.f32 %v133, %v68
    %v142 = vmul.f32 %v134, %v68
    %v143 = vmul.f32 %v135, %v68
    %v144 = vmul.f32 %v136, %v69
    %v145 = vmul.f32 %v137, %v69
    %v146 = vmul.f32 %v138, %v69
    %v147 = vmul.f32 %v139, %v69
    %v148 = vsel %vm71, %v132, 0.0
    %v149 = vsel %vm71, %v136, 0.0
    %v150 = vadd.f32 %v148, %v149
    %v151 = vsel %vm71, %v133, 0.0
    %v152 = vsel %vm71, %v137, 0.0
    %v153 = vadd.f32 %v151, %v152
    %v154 = vsel %vm71, %v134, 0.0
    %v155 = vsel %vm71, %v138, 0.0
    %v156 = vadd.f32 %v154, %v155
    %v157 = vsel %vm71, %v135, 0.0
    %v158 = vsel %vm71, %v139, 0.0
    %v159 = vadd.f32 %v157, %v158
    %v160 = vsel %vm71, %v150, 0.0
    %v161 = vrot.slane %v160, 4
    %v162 = vadd.f32 %v160, %v161
    %v163 = vrot.slane %v162, 2
    %v164 = vadd.f32 %v162, %v163
    %v165 = vrot.slane %v164, 1
    %v166 = vadd.f32 %v164, %v165
    %v167 = vsel %vm71, %v153, 0.0
    %v168 = vrot.slane %v167, 4
    %v169 = vadd.f32 %v167, %v168
    %v170 = vrot.slane %v169, 2
    %v171 = vadd.f32 %v169, %v170
    %v172 = vrot.slane %v171, 1
    %v173 = vadd.f32 %v171, %v172
    %v174 = vsel %vm71, %v156, 0.0
    %v175 = vrot.slane %v174, 4
    %v176 = vadd.f32 %v174, %v175
    %v177 = vrot.slane %v176, 2
    %v178 = vadd.f32 %v176, %v177
    %v179 = vrot.slane %v178, 1
    %v180 = vadd.f32 %v178, %v179
    %v181 = vsel %vm71, %v159, 0.0
    %v182 = vrot.slane %v181, 4
    %v183 = vadd.f32 %v181, %v182
    %v184 = vrot.slane %v183, 2
    %v185 = vadd.f32 %v183, %v184
    %v186 = vrot.slane %v185, 1
    %v187 = vadd.f32 %v185, %v186
    %v188 = vadd.f32 %v166, 0.0
    %v189 = vadd.f32 %v173, 0.0
    %v190 = vadd.f32 %v180, 0.0
    %v191 = vadd.f32 %v187, 0.0
    %v192 = vsel %vm71, %v140, 0.0
    %v193 = vsel %vm71, %v144, 0.0
    %v194 = vadd.f32 %v192, %v193
    %v195 = vsel %vm71, %v141, 0.0
    %v196 = vsel %vm71, %v145, 0.0
    %v197 = vadd.f32 %v195, %v196
    %v198 = vsel %vm71, %v142, 0.0
    %v199 = vsel %vm71, %v146, 0.0
    %v200 = vadd.f32 %v198, %v199
    %v201 = vsel %vm71, %v143, 0.0
    %v202 = vsel %vm71, %v147, 0.0
    %v203 = vadd.f32 %v201, %v202
    %v204 = vsel %vm71, %v194, 0.0
    %v205 = vrot.slane %v204, 4
    %v206 = vadd.f32 %v204, %v205
    %v207 = vrot.slane %v206, 2
    %v208 = vadd.f32 %v206, %v207
    %v209 = vrot.slane %v208, 1
    %v210 = vadd.f32 %v208, %v209
    %v211 = vsel %vm71, %v197, 0.0
    %v212 = vrot.slane %v211, 4
    %v213 = vadd.f32 %v211, %v212
    %v214 = vrot.slane %v213, 2
    %v215 = vadd.f32 %v213, %v214
    %v216 = vrot.slane %v215, 1
    %v217 = vadd.f32 %v215, %v216
    %v218 = vsel %vm71, %v200, 0.0
    %v219 = vrot.slane %v218, 4
    %v220 = vadd.f32 %v218, %v219
    %v221 = vrot.slane %v220, 2
    %v222 = vadd.f32 %v220, %v221
    %v223 = vrot.slane %v222, 1
    %v224 = vadd.f32 %v222, %v223
    %v225 = vsel %vm71, %v203, 0.0
    %v226 = vrot.slane %v225, 4
    %v227 = vadd.f32 %v225, %v226
    %v228 = vrot.slane %v227, 2
    %v229 = vadd.f32 %v227, %v228
    %v230 = vrot.slane %v229, 1
    %v231 = vadd.f32 %v229, %v230
    %v232 = vadd.f32 %v210, 0.0
    %v233 = vadd.f32 %v217, 0.0
    %v234 = vadd.f32 %v224, 0.0
    %v235 = vadd.f32 %v231, 0.0
    %v236 = vmul.f32 %v140, %v68
    %v237 = vmul.f32 %v141, %v68
    %v238 = vmul.f32 %v142, %v68
    %v239 = vmul.f32 %v143, %v68
    %v240 = vmul.f32 %v144, %v69
    %v241 = vmul.f32 %v145, %v69
    %v242 = vmul.f32 %v146, %v69
    %v243 = vmul.f32 %v147, %v69
    %v244 = vsel %vm71, %v236, 0.0
    %v245 = vsel %vm71, %v240, 0.0
    %v246 = vadd.f32 %v244, %v245
    %v247 = vsel %vm71, %v237, 0.0
    %v248 = vsel %vm71, %v241, 0.0
    %v249 = vadd.f32 %v247, %v248
    %v250 = vsel %vm71, %v238, 0.0
    %v251 = vsel %vm71, %v242, 0.0
    %v252 = vadd.f32 %v250, %v251
    %v253 = vsel %vm71, %v239, 0.0
    %v254 = vsel %vm71, %v243, 0.0
    %v255 = vadd.f32 %v253, %v254
    %v256 = vsel %vm71, %v246, 0.0
    %v257 = vrot.slane %v256, 4
    %v258 = vadd.f32 %v256, %v257
    %v259 = vrot.slane %v258, 2
    %v260 = vadd.f32 %v258, %v259
    %v261 = vrot.slane %v260, 1
    %v262 = vadd.f32 %v260, %v261
    %v263 = vsel %vm71, %v249, 0.0
    %v264 = vrot.slane %v263, 4
    %v265 = vadd.f32 %v263, %v264
    %v266 = vrot.slane %v265, 2
    %v267 = vadd.f32 %v265, %v266
    %v268 = vrot.slane %v267, 1
    %v269 = vadd.f32 %v267, %v268
    %v270 = vsel %vm71, %v252, 0.0
    %v271 = vrot.slane %v270, 4
    %v272 = vadd.f32 %v270, %v271
    %v273 = vrot.slane %v272, 2
    %v274 = vadd.f32 %v272, %v273
    %v275 = vrot.slane %v274, 1
    %v276 = vadd.f32 %v274, %v275
    %v277 = vsel %vm71, %v255, 0.0
    %v278 = vrot.slane %v277, 4
    %v279 = vadd.f32 %v277, %v278
    %v280 = vrot.slane %v279, 2
    %v281 = vadd.f32 %v279, %v280
    %v282 = vrot.slane %v281, 1
    %v283 = vadd.f32 %v281, %v282
    %v284 = vadd.f32 %v262, 0.0
    %v285 = vadd.f32 %v269, 0.0
    %v286 = vadd.f32 %v276, 0.0
    %v287 = vadd.f32 %v283, 0.0
    %v288 = vmul.f32 %v132, %v70
    %v289 = vmul.f32 %v133, %v70
    %v290 = vmul.f32 %v134, %v70
    %v291 = vmul.f32 %v135, %v70
    %v292 = vmul.f32 %v136, %v70
    %v293 = vmul.f32 %v137, %v70
    %v294 = vmul.f32 %v138, %v70
    %v295 = vmul.f32 %v139, %v70
    %v296 = vsel %vm71, %v288, 0.0
    %v297 = vsel %vm71, %v292, 0.0
    %v298 = vadd.f32 %v296, %v297
    %v299 = vsel %vm71, %v289, 0.0
    %v300 = vsel %vm71, %v293, 0.0
    %v301 = vadd.f32 %v299, %v300
    %v302 = vsel %vm71, %v290, 0.0
    %v303 = vsel %vm71, %v294, 0.0
    %v304 = vadd.f32 %v302, %v303
    %v305 = vsel %vm71, %v291, 0.0
    %v306 = vsel %vm71, %v295, 0.0
    %v307 = vadd.f32 %v305, %v306
    %v308 = vsel %vm71, %v298, 0.0
    %v309 = vrot.slane %v308, 4
    %v310 = vadd.f32 %v308, %v309
    %v311 = vrot.slane %v310, 2
    %v312 = vadd.f32 %v310, %v311
    %v313 = vrot.slane %v312, 1
    %v314 = vadd.f32 %v312, %v313
    %v315 = vsel %vm71, %v301, 0.0
    %v316 = vrot.slane %v315, 4
    %v317 = vadd.f32 %v315, %v316
    %v318 = vrot.slane %v317, 2
    %v319 = vadd.f32 %v317, %v318
    %v320 = vrot.slane %v319, 1
    %v321 = vadd.f32 %v319, %v320
    %v322 = vsel %vm71, %v304, 0.0
    %v323 = vrot.slane %v322, 4
    %v324 = vadd.f32 %v322, %v323
    %v325 = vrot.slane %v324, 2
    %v326 = vadd.f32 %v324, %v325
    %v327 = vrot.slane %v326, 1
    %v328 = vadd.f32 %v326, %v327
    %v329 = vsel %vm71, %v307, 0.0
    %v330 = vrot.slane %v329, 4
    %v331 = vadd.f32 %v329, %v330
    %v332 = vrot.slane %v331, 2
    %v333 = vadd.f32 %v331, %v332
    %v334 = vrot.slane %v333, 1
    %v335 = vadd.f32 %v333, %v334
    %v336 = vadd.f32 %v314, 0.0
    %v337 = vadd.f32 %v321, 0.0
    %v338 = vadd.f32 %v328, 0.0
    %v339 = vadd.f32 %v335, 0.0
    %vm344 = vcmask 1041409
    %v345 = vsel %vm344, %v189, %v188
    %vm346 = vcmask 1042434
    %v347 = vsel %vm346, %v190, %v345
    %vm348 = vcmask 1043459
    %v349 = vsel %vm348, %v191, %v347
    %vm355 = vcmask 1045509
    %v356 = vsel %vm355, %v233, %v232
    %vm357 = vcmask 1046534
    %v358 = vsel %vm357, %v234, %v356
    %vm359 = vcmask 1047559
    %v360 = vsel %vm359, %v235, %v358
    %v366 = vsel %vm344, %v285, %v284
    %v367 = vsel %vm346, %v286, %v366
    %v368 = vsel %vm348, %v287, %v367
    %v374 = vsel %vm355, %v337, %v336
    %v375 = vsel %vm357, %v338, %v374
    %v376 = vsel %vm359, %v339, %v375
    %vm378 = vcmask 1043456
    %v379 = vsel %vm378, %v349, %v360
    %v380 = vsel %vm378, %v368, %v376
    %381 = vst [vmem:[#allocation8] sm:$0xff] %v379
    %382 = vst [vmem:[#allocation8 + $0x8] sm:$0xff] %v380
    // Predicated region
    $region26: #{tpu_custom_call.1} parent=1 // pred_check
      _
    $region27: #{tpu_custom_call.1} parent=1 // pred_check_branch
      %384 = sbr.rel (0) target = $region29
    $region28: #{tpu_custom_call.1} parent=1 // pred_region
      %386 = vsyncadd [#allocation4], 0
      %s387 = sshll.u32 [#allocation8], 4
      %s388 = int_to_ptr.vmem [resolvable:$true] %s387
      %s389 = sshll.u32 %s3, 4
      %s390 = int_to_ptr.hbm [resolvable:$true] %s389
      %395 = dma.vmem_to_hbm [thread:$0]  %s388, 256, %s390, [#allocation4], 128, 128, 8
    $region29: #{tpu_custom_call.1} parent=1 // pred_fallthru
      _
    // Predicated region
    $region30: #{tpu_custom_call.1} parent=1 // pred_check
      _
    $region31: #{tpu_custom_call.1} parent=1 // pred_check_branch
      %397 = sbr.rel (0) target = $region33
    $region32: #{tpu_custom_call.1} parent=1 // pred_region
      %399 = dma.done [#allocation4], 256
    $region33: #{tpu_custom_call.1} parent=1 // pred_fallthru
      _
    %400 = vsyncpa [#allocation3], 1
    %401 = vsyncpa [#allocation6], 1
    %402 = vsyncpa [#allocation4], 1

</llo_original>
